<compile_context>
chip_gen: v7x
topology: tpu7x:2x2x1
jax: 0.10.0
libtpu: 0.0.40
codegen_flags: <defaults>
</compile_context>

<pallas_src>
import jax
import jax.numpy as jnp
from jax.experimental import pallas as pl
from jax.experimental.pallas import tpu as pltpu

_LANES = 1024            # lane-dense slab width (multiple of 128)
_MAX_TILE_ROWS = 512     # 512 * 1024 * 4 B = 2 MiB / buffer; (in+out) x2 bufs = 8 MiB VMEM
_PALLAS_MIN_ELEMS = 1 << 15  # below this, one fused XLA pass beats kernel launch + pad/slice


def _logreg_kernel(x_ref, wb_ref, o_ref):
    # x_ref: (tile_rows, 1024) f32 in VMEM; wb_ref: (2,) f32 in SMEM = [w, b].
    w = wb_ref[0]
    b = wb_ref[1]
    # Pure VPU fma + EUP sigmoid; no MXU, no (1,1) tiles.
    o_ref[...] = jax.nn.sigmoid(x_ref[...] * w + b)


def logistic_regression(x, weight, bias, *, force_pallas=False,
                        max_tile_rows=_MAX_TILE_ROWS):
    """x: (B, 1); weight: (1, 1) [out, in]; bias: (1,).

    Returns sigmoid(x @ W^T + b) with shape (B, 1) — same semantics as
    torch.sigmoid(nn.Linear(1, 1)(x)).
    """
    B, Fin = x.shape
    assert Fin == 1 and weight.shape == (1, 1) and bias.shape == (1,)

    w = weight.reshape(()).astype(jnp.float32)
    b = bias.reshape(()).astype(jnp.float32)

    if B == 0:  # guard: empty batch, never build a grid=(0,) kernel
        return jnp.zeros((0, 1), jnp.float32)

    x_flat = x.reshape(-1).astype(jnp.float32)  # (B,)

    if B < _PALLAS_MIN_ELEMS and not force_pallas:
        # Small-batch fallback: XLA fuses mul+add+sigmoid into one HBM pass.
        return jax.nn.sigmoid(x_flat * w + b).reshape(B, 1)

    # Lane-dense packing: (B,) -> (rows, 1024). Pad only to the next multiple of
    # the slab width; the ragged last *block* is handled by Pallas itself.
    rows = -(-B // _LANES)
    n_padded = rows * _LANES
    padded = n_padded != B
    if padded:
        x_flat_p = jnp.zeros((n_padded,), jnp.float32).at[:B].set(x_flat)
    else:
        x_flat_p = x_flat  # fast path: contiguous reshape, no extra HBM pass
    x2d = x_flat_p.reshape(rows, _LANES)

    # Scalar parameters go to SMEM (no HBM->VMEM tile DMA, no vreg broadcast tile).
    wb = jnp.stack([w, b])  # (2,) f32

    # Block sizing: either the whole slab (block == full array dims) or a
    # (max_tile_rows, 1024) tile (multiple of (8, 128)); ragged last block is OK.
    tile_rows = rows if rows <= max_tile_rows else max_tile_rows
    grid = (pl.cdiv(rows, tile_rows),)

    out2d = pl.pallas_call(
        _logreg_kernel,
        out_shape=jax.ShapeDtypeStruct((rows, _LANES), jnp.float32),
        grid_spec=pl.GridSpec(
            grid=grid,
            in_specs=[
                pl.BlockSpec((tile_rows, _LANES), lambda i: (i, 0)),
                pl.BlockSpec(memory_space=pltpu.MemorySpace.SMEM),
            ],
            out_specs=pl.BlockSpec((tile_rows, _LANES), lambda i: (i, 0)),
        ),
        # "parallel" batch axis: pipelined, and megacore-sharded across the 2 TCs on v7x.
        compiler_params=pltpu.CompilerParams(
            dimension_semantics=("parallel",)),
    )(x2d, wb)

    if padded:
        # Drop the padded tail (holds sigmoid(b)) and restore (B, 1).
        return out2d.reshape(-1)[:B].reshape(B, 1)
    return out2d.reshape(B, 1)  # no pad was added -> no slice copy


if __name__ == "__main__":
    key = jax.random.PRNGKey(0)
    kx, kw, kb = jax.random.split(key, 3)

    # Deterministic parameter init (mimics nn.Linear uniform bound for in_features=1).
    weight = jax.random.uniform(kw, (1, 1), minval=-1.0, maxval=1.0,
                                dtype=jnp.float32)
    bias = jax.random.uniform(kb, (1,), minval=-1.0, maxval=1.0,
                              dtype=jnp.float32)

    def ref_fn(xb):
        return jax.nn.sigmoid(xb @ weight.T + bias)

    def check(B, **kw_args):
        xb = jax.random.normal(jax.random.fold_in(kx, B), (B, 1),
                               dtype=jnp.float32)
        out = jax.block_until_ready(logistic_regression(xb, weight, bias,
                                                        **kw_args))
        ref = ref_fn(xb)
        assert out.shape == (B, 1), (B, out.shape)
        assert jnp.allclose(out, ref, atol=1e-6), (B, out, ref)

    # Small batches: fallback path (fused XLA) and forced-Pallas path.
    for B in (8, 300):
        check(B)                       # fallback path
        check(B, force_pallas=True)    # single-block Pallas path (padded slab)

    # Multiple of the slab width: exercises the no-pad / no-slice fast path.
    check(2048, force_pallas=True)

    # Multi-block grid with a ragged last block (small max_tile_rows to keep it tiny):
    # rows = 36, tile_rows = 8 -> grid = (5,), last block partially out of bounds.
    check(36 * 1024, force_pallas=True, max_tile_rows=8)
    # Same, plus a padded tail inside the last valid row.
    check(36 * 1024 - 500, force_pallas=True, max_tile_rows=8)

    print("KERNEL_OK")
</pallas_src>

<mosaic_0001>
module attributes {stable_mosaic.version = 11 : i64} {
  func.func @_logreg_kernel(%arg0: i32, %arg1: memref<1x1024xf32, #tpu.memory_space<vmem>>, %arg2: memref<2xf32, #tpu.memory_space<smem>>, %arg3: memref<1x1024xf32, #tpu.memory_space<vmem>>) attributes {dimension_semantics = [#tpu.dimension_semantics<parallel>], iteration_bounds = array<i64: 1>, scalar_prefetch = 0 : i64, scratch_operands = 0 : i64, tpu.core_type = #tpu.core_type<tc>, window_params = [{transform_indices = @transform_0, window_bounds = array<i64: 1, 1024>}, {transform_indices = @transform_1, window_bounds = array<i64: 2>}, {transform_indices = @transform_2, window_bounds = array<i64: 1, 1024>}]} {
    %c0 = arith.constant 0 : index
    %0 = memref.load %arg2[%c0] : memref<2xf32, #tpu.memory_space<smem>>
    %c1 = arith.constant 1 : index
    %1 = memref.load %arg2[%c1] : memref<2xf32, #tpu.memory_space<smem>>
    %c0_0 = arith.constant 0 : index
    %c0_1 = arith.constant 0 : index
    %2 = vector.load %arg1[%c0_0, %c0_1] : memref<1x1024xf32, #tpu.memory_space<vmem>>, vector<1x1024xf32>
    %3 = vector.broadcast %0 : f32 to vector<1x1024xf32>
    %4 = arith.mulf %2, %3 : vector<1x1024xf32>
    %5 = vector.broadcast %1 : f32 to vector<1x1024xf32>
    %6 = arith.addf %4, %5 : vector<1x1024xf32>
    %7 = arith.negf %6 : vector<1x1024xf32>
    %8 = math.exp %7 : vector<1x1024xf32>
    %cst = arith.constant 1.000000e+00 : f32
    %9 = vector.broadcast %cst : f32 to vector<1x1024xf32>
    %10 = arith.addf %9, %8 : vector<1x1024xf32>
    %11 = arith.divf %9, %10 : vector<1x1024xf32>
    %c0_2 = arith.constant 0 : index
    %c0_3 = arith.constant 0 : index
    %12 = vector.load %arg3[%c0_2, %c0_3] : memref<1x1024xf32, #tpu.memory_space<vmem>>, vector<1x1024xf32>
    tpu.vector_store %arg3[%c0_2, %c0_3], %11 {strides = array<i32>} : memref<1x1024xf32, #tpu.memory_space<vmem>>, vector<1x1024xf32>,
    return
  }
  func.func @transform_0(%arg0: i32) -> (i32, i32) {
    %c0_i32 = arith.constant 0 : i32
    %c0_i32_0 = arith.constant 0 : i32
    return %arg0, %c0_i32 : i32, i32
  }
  func.func @transform_1(%arg0: i32) -> i32 {
    %c0_i32 = arith.constant 0 : i32
    %c0_i32_0 = arith.constant 0 : i32
    return %c0_i32 : i32
  }
  func.func @transform_2(%arg0: i32) -> (i32, i32) {
    %c0_i32 = arith.constant 0 : i32
    %c0_i32_0 = arith.constant 0 : i32
    return %arg0, %c0_i32 : i32, i32
  }
}

</mosaic_0001>

<llo_original>
// kernel: tpu_custom_call.1
$region0: #{tpu_custom_call.1}
  #allocation0 [shape = 'u32[]', space=smem, size = 0x4, offset = 0x4, fixed_abs, tag = 'smem constant byte address 0x4 - core index']
  #allocation1 [shape = 'u32[144,128]{1,0:T(1,128)}', space=vmem, size = 0x12000, scoped, tag = 'internal scratch']
  %s0 = inlined_call_operand.hbm [shape: f32[1,1024], index: 0, kind: input, shape index: {}]
  %s1 = inlined_call_operand.vmem [shape: f32[2], index: 1, kind: input, shape index: {}]
  %s2 = inlined_call_operand.hbm [shape: f32[1,1024], index: 2, kind: output, shape index: {}]
  %s3 = sld [smem:[#allocation0]]
  $region26: #{tpu_custom_call.1} parent=0
    _
  %s5 = ssub.s32 1, %s3
  %s6 = scalar_select 0, %s5, %s3
  $region1: #{tpu_custom_call.1} parent=0
    #allocation2 [shape = 'u8[4096]{0}', space=vmem, size = 0x1000, scoped, tag = 'input window, operand 0, single buffered']
    #allocation3 [shape = 's32[1]{0}', space=sflag, size = 0x4, scoped, tag = 'scoped memory for tpu_custom_call.1']
    #allocation4 [shape = 's32[1]{0}', space=sflag, size = 0x4, scoped, tag = 'scoped memory for tpu_custom_call.1']
    #allocation5 [shape = 's32[1]{0}', space=sflag, size = 0x4, scoped, tag = 'scoped memory for tpu_custom_call.1']
    #allocation6 [shape = 'u8[512]{0}', space=smem, size = 0x200, scoped, tag = 'input window, operand 1, single buffered']
    #allocation7 [shape = 'u8[4096]{0}', space=vmem, size = 0x1000, scoped, tag = 'output window, operand 0, single buffered']
    %7 = vsyncpa [#allocation3], 0
    %8 = vsyncpa [#allocation5], 0
    %9 = vsyncpa [#allocation4], 0
    // Predicated region
    $region2: #{tpu_custom_call.1} parent=1 // pred_check
      _
    $region3: #{tpu_custom_call.1} parent=1 // pred_check_branch
      %11 = sbr.rel (0) target = $region5
    $region4: #{tpu_custom_call.1} parent=1 // pred_region
      %s13 = ssub.s32 128, 128
      %14 = vsyncadd [#allocation3], %s13
      %s16 = sshll.u32 [#allocation2], 4
      %s17 = int_to_ptr.vmem [resolvable:$true] %s16
      %19 = dma.hbm_to_vmem [thread:$0]  %s0, 128, %s17, [#allocation3]
    $region5: #{tpu_custom_call.1} parent=1 // pred_fallthru
      _
    // Predicated region
    $region6: #{tpu_custom_call.1} parent=1 // pred_check
      _
    $region7: #{tpu_custom_call.1} parent=1 // pred_check_branch
      %21 = sbr.rel (0) target = $region9
    $region8: #{tpu_custom_call.1} parent=1 // pred_region
      %s23 = ssub.s32 16, 16
      %24 = vsyncadd [#allocation5], %s23
      %s26 = sshll.u32 %s1, 4
      %s27 = int_to_ptr.vmem [resolvable:$true] %s26
      %29 = dma.vmem_to_smem %s27, 16, [#allocation6], [#allocation5]
    $region9: #{tpu_custom_call.1} parent=1 // pred_fallthru
      _
    // Predicated region
    $region10: #{tpu_custom_call.1} parent=1 // pred_check
      _
    $region11: #{tpu_custom_call.1} parent=1 // pred_check_branch
      %31 = sbr.rel (0) target = $region13
    $region12: #{tpu_custom_call.1} parent=1 // pred_region
      %32 = dma.done [#allocation3], 128
    $region13: #{tpu_custom_call.1} parent=1 // pred_fallthru
      _
    // Predicated region
    $region14: #{tpu_custom_call.1} parent=1 // pred_check
      _
    $region15: #{tpu_custom_call.1} parent=1 // pred_check_branch
      %34 = sbr.rel (0) target = $region17
    $region16: #{tpu_custom_call.1} parent=1 // pred_region
      %35 = dma.done [#allocation5], 16
    $region17: #{tpu_custom_call.1} parent=1 // pred_fallthru
      _
    %36 = sfence
    %s37 = sld [smem:[#allocation6]]
    %s38 = sld [smem:[#allocation6 + $0x1]]
    %v39 = vld [vmem:[#allocation2] sm:$0xff]
    %v40 = vstv %s37
    %v41 = vmul.f32 %v39, %v40
    %v42 = vstv %s38
    %v43 = vadd.f32 %v41, %v42
    %v44 = vxor.u32 %v43, 2147483648
    %v45 = vmul.f32 %v44, 1.442695
    %v46 = vpow.pop %v45
    %v47 = vadd.f32 %v46, 1.0
    %v48 = vrcp.pop %v47
    %v49 = vmul.f32 1.0, %v48
    %50 = vst [vmem:[#allocation7] sm:$0xff] %v49
    // Predicated region
    $region18: #{tpu_custom_call.1} parent=1 // pred_check
      _
    $region19: #{tpu_custom_call.1} parent=1 // pred_check_branch
      %52 = sbr.rel (0) target = $region21
    $region20: #{tpu_custom_call.1} parent=1 // pred_region
      %s54 = ssub.s32 128, 128
      %55 = vsyncadd [#allocation4], %s54
      %s57 = sshll.u32 [#allocation7], 4
      %s58 = int_to_ptr.vmem [resolvable:$true] %s57
      %60 = dma.vmem_to_hbm [thread:$0]  %s58, 128, %s2, [#allocation4]
    $region21: #{tpu_custom_call.1} parent=1 // pred_fallthru
      _
    // Predicated region
    $region22: #{tpu_custom_call.1} parent=1 // pred_check
      _
    $region23: #{tpu_custom_call.1} parent=1 // pred_check_branch
      %62 = sbr.rel (0) target = $region25
    $region24: #{tpu_custom_call.1} parent=1 // pred_region
      %63 = dma.done [#allocation4], 128
    $region25: #{tpu_custom_call.1} parent=1 // pred_fallthru
      _
    %64 = vsyncpa [#allocation3], 1
    %65 = vsyncpa [#allocation4], 1
    %66 = vsyncpa [#allocation5], 1

</llo_original>
